<compile_context>
chip_gen: v7x
topology: tpu7x:2x2x1
jax: 0.10.0
libtpu: 0.0.40
codegen_flags: <defaults>
</compile_context>

<pallas_src>
import functools

import jax
import jax.numpy as jnp
from jax.experimental import pallas as pl
from jax.experimental.pallas import tpu as pltpu


def _backedge_kernel(x_ref, out_ref, *, K, H, W, p, thr, lo, hi):
    # x_ref / out_ref block: (TB, H, W)
    x = x_ref[...]
    cond = (x >= thr).astype(jnp.float32)

    # ---- reflect halo along W (lane dim), built from static 1-column slices.
    # padded col j (j<p) -> original col p-j ; padded col p+W+k -> original W-2-k
    cols = [cond[:, :, p - j:p - j + 1] for j in range(p)]
    cols.append(cond)
    cols += [cond[:, :, W - 2 - j:W - 1 - j] for j in range(p)]
    cw = cols[0] if len(cols) == 1 else jnp.concatenate(cols, axis=2)  # (TB, H, W+2p)

    # ---- separable box sum, W direction first: K shifted adds.
    row = cw[:, :, 0:W]
    for dj in range(1, K):
        row = row + cw[:, :, dj:dj + W]                                # (TB, H, W)

    # ---- reflect halo along H (sublane dim) on the row sums.
    rows = [row[:, p - i:p - i + 1, :] for i in range(p)]
    rows.append(row)
    rows += [row[:, H - 2 - i:H - 1 - i, :] for i in range(p)]
    rh = rows[0] if len(rows) == 1 else jnp.concatenate(rows, axis=1)  # (TB, H+2p, W)

    # ---- H direction: K shifted adds.
    s = rh[:, 0:H, :]
    for di in range(1, K):
        s = s + rh[:, di:di + H, :]                                    # (TB, H, W)

    # ---- threshold band -> "black" pixels are zeroed; single select.
    in_range = jnp.logical_and(s >= lo, s <= hi)
    out_ref[...] = jnp.where(in_range, jnp.zeros_like(x), x).astype(out_ref.dtype)


def back_edge_conv2d(x, *, kernel_size, threshold, tolerance):
    """Pallas implementation of BackEdgeConv2d.forward. x: (N, C, H, W) float32."""
    N, C, H, W = x.shape
    p = kernel_size // 2
    NC = N * C
    xf = x.reshape(NC, H, W)

    thr = threshold / 255.0
    base = (kernel_size * kernel_size) // 2      # integer division, as in torch code
    lo = float(base * tolerance)
    hi = float(base * (1.0 - tolerance))

    # --- choose planes-per-block (TB): largest divisor of NC under a VMEM
    # budget (conservative enough for v5e's 16 MiB scoped default), keeping at
    # least 2 grid steps when possible so the "parallel" axis can be sharded
    # across both TensorCores on v7x.
    plane_bytes = H * W * 4
    budget = 12 * 1024 * 1024
    # rough per-plane VMEM cost: double-buffered in+out + cond/row/s temporaries
    tb_cap = max(1, budget // (8 * plane_bytes))
    divisors = [d for d in range(1, NC + 1) if NC % d == 0]
    candidates = [d for d in divisors if d <= tb_cap]
    two_step = [d for d in candidates if NC // d >= 2]
    if two_step:
        tb = max(two_step)
    elif candidates:
        tb = max(candidates)
    else:
        tb = 1
    grid = (NC // tb,)

    kernel = functools.partial(
        _backedge_kernel, K=kernel_size, H=H, W=W, p=p, thr=thr, lo=lo, hi=hi
    )

    out = pl.pallas_call(
        kernel,
        out_shape=jax.ShapeDtypeStruct((NC, H, W), x.dtype),
        grid=grid,
        in_specs=[pl.BlockSpec((tb, H, W), lambda i: (i, 0, 0))],
        out_specs=pl.BlockSpec((tb, H, W), lambda i: (i, 0, 0)),
        compiler_params=pltpu.CompilerParams(dimension_semantics=("parallel",)),
    )(xf)
    return out.reshape(N, C, H, W)


def _reference(x, *, kernel_size, threshold, tolerance):
    """Pure-JAX reference mirroring the PyTorch forward, for verification."""
    N, C, H, W = x.shape
    p = kernel_size // 2
    cond = (x >= threshold / 255.0).astype(jnp.float32)
    cond = jnp.pad(cond, ((0, 0), (0, 0), (p, p), (p, p)), mode="reflect")
    s = jnp.zeros((N, C, H, W), jnp.float32)
    for di in range(kernel_size):
        for dj in range(kernel_size):
            s = s + cond[:, :, di:di + H, dj:dj + W]
    base = (kernel_size * kernel_size) // 2
    lo = base * tolerance
    hi = base * (1.0 - tolerance)
    black = jnp.logical_and(s >= lo, s <= hi).astype(jnp.float32)
    return x * (1.0 - black)


if __name__ == "__main__":
    # Module config (deterministic, in-script). The conv "weight" is the
    # implicit all-ones depthwise kernel registered as a buffer in __init__.
    kernel_size = 3
    channels = 4
    threshold = 128.0
    tolerance = 0.25

    key = jax.random.PRNGKey(0)
    x = jax.random.uniform(key, (2, channels, 16, 16), dtype=jnp.float32)

    out = back_edge_conv2d(
        x, kernel_size=kernel_size, threshold=threshold, tolerance=tolerance
    )
    out = jax.block_until_ready(out)

    ref = _reference(
        x, kernel_size=kernel_size, threshold=threshold, tolerance=tolerance
    )
    assert out.shape == x.shape and out.dtype == x.dtype
    assert jnp.allclose(out, ref, atol=1e-6), "mismatch vs reference"

    print("KERNEL_OK")
</pallas_src>

<mosaic_0001>
module attributes {stable_mosaic.version = 11 : i64} {
  func.func @_backedge_kernel(%arg0: i32, %arg1: memref<4x16x16xf32, #tpu.memory_space<vmem>>, %arg2: memref<4x16x16xf32, #tpu.memory_space<vmem>>) attributes {dimension_semantics = [#tpu.dimension_semantics<parallel>], iteration_bounds = array<i64: 2>, scalar_prefetch = 0 : i64, scratch_operands = 0 : i64, tpu.core_type = #tpu.core_type<tc>, window_params = [{transform_indices = @transform_0, window_bounds = array<i64: 4, 16, 16>}, {transform_indices = @transform_1, window_bounds = array<i64: 4, 16, 16>}]} {
    %c0 = arith.constant 0 : index
    %c0_0 = arith.constant 0 : index
    %c0_1 = arith.constant 0 : index
    %0 = vector.load %arg1[%c0, %c0_0, %c0_1] : memref<4x16x16xf32, #tpu.memory_space<vmem>>, vector<4x16x16xf32>
    %cst = arith.constant 0.501960814 : f32
    %1 = vector.broadcast %cst : f32 to vector<4x16x16xf32>
    %2 = arith.cmpf oge, %0, %1 : vector<4x16x16xf32>
    %3 = arith.extui %2 : vector<4x16x16xi1> to vector<4x16x16xi32>
    %4 = arith.sitofp %3 : vector<4x16x16xi32> to vector<4x16x16xf32>
    %5 = vector.extract_strided_slice %4 {offsets = [0, 0, 1], sizes = [4, 16, 1], strides = [1, 1, 1]} : vector<4x16x16xf32> to vector<4x16x1xf32>
    %6 = vector.extract_strided_slice %4 {offsets = [0, 0, 14], sizes = [4, 16, 1], strides = [1, 1, 1]} : vector<4x16x16xf32> to vector<4x16x1xf32>
    %7 = tpu.concatenate %5, %4, %6 in 2 : vector<4x16x1xf32>, vector<4x16x16xf32>, vector<4x16x1xf32> -> vector<4x16x18xf32>
    %8 = vector.extract_strided_slice %7 {offsets = [0, 0, 0], sizes = [4, 16, 16], strides = [1, 1, 1]} : vector<4x16x18xf32> to vector<4x16x16xf32>
    %9 = vector.extract_strided_slice %7 {offsets = [0, 0, 1], sizes = [4, 16, 16], strides = [1, 1, 1]} : vector<4x16x18xf32> to vector<4x16x16xf32>
    %10 = arith.addf %8, %9 : vector<4x16x16xf32>
    %11 = vector.extract_strided_slice %7 {offsets = [0, 0, 2], sizes = [4, 16, 16], strides = [1, 1, 1]} : vector<4x16x18xf32> to vector<4x16x16xf32>
    %12 = arith.addf %10, %11 : vector<4x16x16xf32>
    %13 = vector.extract_strided_slice %12 {offsets = [0, 1, 0], sizes = [4, 1, 16], strides = [1, 1, 1]} : vector<4x16x16xf32> to vector<4x1x16xf32>
    %14 = vector.extract_strided_slice %12 {offsets = [0, 14, 0], sizes = [4, 1, 16], strides = [1, 1, 1]} : vector<4x16x16xf32> to vector<4x1x16xf32>
    %15 = tpu.concatenate %13, %12, %14 in 1 : vector<4x1x16xf32>, vector<4x16x16xf32>, vector<4x1x16xf32> -> vector<4x18x16xf32>
    %16 = vector.extract_strided_slice %15 {offsets = [0, 0, 0], sizes = [4, 16, 16], strides = [1, 1, 1]} : vector<4x18x16xf32> to vector<4x16x16xf32>
    %17 = vector.extract_strided_slice %15 {offsets = [0, 1, 0], sizes = [4, 16, 16], strides = [1, 1, 1]} : vector<4x18x16xf32> to vector<4x16x16xf32>
    %18 = arith.addf %16, %17 : vector<4x16x16xf32>
    %19 = vector.extract_strided_slice %15 {offsets = [0, 2, 0], sizes = [4, 16, 16], strides = [1, 1, 1]} : vector<4x18x16xf32> to vector<4x16x16xf32>
    %20 = arith.addf %18, %19 : vector<4x16x16xf32>
    %cst_2 = arith.constant 1.000000e+00 : f32
    %21 = vector.broadcast %cst_2 : f32 to vector<4x16x16xf32>
    %22 = arith.cmpf oge, %20, %21 : vector<4x16x16xf32>
    %cst_3 = arith.constant 3.000000e+00 : f32
    %23 = vector.broadcast %cst_3 : f32 to vector<4x16x16xf32>
    %24 = arith.cmpf ole, %20, %23 : vector<4x16x16xf32>
    %25 = arith.andi %22, %24 : vector<4x16x16xi1>
    %cst_4 = arith.constant 0.000000e+00 : f32
    %26 = vector.broadcast %cst_4 : f32 to vector<4x16x16xf32>
    %27 = arith.select %25, %26, %0 : vector<4x16x16xi1>, vector<4x16x16xf32>
    %c0_5 = arith.constant 0 : index
    %c0_6 = arith.constant 0 : index
    %c0_7 = arith.constant 0 : index
    %28 = vector.load %arg2[%c0_5, %c0_6, %c0_7] : memref<4x16x16xf32, #tpu.memory_space<vmem>>, vector<4x16x16xf32>
    tpu.vector_store %arg2[%c0_5, %c0_6, %c0_7], %27 {strides = array<i32>} : memref<4x16x16xf32, #tpu.memory_space<vmem>>, vector<4x16x16xf32>,
    return
  }
  func.func @transform_0(%arg0: i32) -> (i32, i32, i32) {
    %c0_i32 = arith.constant 0 : i32
    %c0_i32_0 = arith.constant 0 : i32
    %c0_i32_1 = arith.constant 0 : i32
    return %arg0, %c0_i32, %c0_i32_0 : i32, i32, i32
  }
  func.func @transform_1(%arg0: i32) -> (i32, i32, i32) {
    %c0_i32 = arith.constant 0 : i32
    %c0_i32_0 = arith.constant 0 : i32
    %c0_i32_1 = arith.constant 0 : i32
    return %arg0, %c0_i32, %c0_i32_0 : i32, i32, i32
  }
}

</mosaic_0001>

<llo_original>
// kernel: tpu_custom_call.1
$region0: #{tpu_custom_call.1}
  #allocation0 [shape = 'u32[]', space=smem, size = 0x4, offset = 0x4, fixed_abs, tag = 'smem constant byte address 0x4 - core index']
  #allocation1 [shape = 'u32[144,128]{1,0:T(1,128)}', space=vmem, size = 0x12000, scoped, tag = 'internal scratch']
  %s0 = inlined_call_operand.hbm [shape: f32[8,16,16], index: 0, kind: input, shape index: {}]
  %s1 = inlined_call_operand.hbm [shape: f32[8,16,16], index: 1, kind: output, shape index: {}]
  %s2 = sld [smem:[#allocation0]]
  $region41: #{tpu_custom_call.1} parent=0
    _
  %s4 = ssub.s32 1, %s2
  %s5 = scalar_select 0, %s4, %s2
  $region1: #{tpu_custom_call.1} parent=0
    #allocation2 [shape = 'u8[65536]{0}', space=vmem, size = 0x10000, scoped, tag = 'input window, operand 0']
    #allocation3 [shape = 's32[2]{0}', space=sflag, size = 0x8, scoped, tag = 'scoped memory for tpu_custom_call.1']
    #allocation4 [shape = 's32[2]{0}', space=sflag, size = 0x8, scoped, tag = 'scoped memory for tpu_custom_call.1']
    #allocation5 [shape = 'u8[65536]{0}', space=vmem, size = 0x10000, scoped, tag = 'output window, operand 0']
    %6 = vsyncpa [#allocation3], 0
    %s7 = scalar_lea.sflag [#allocation3], 1
    %8 = vsyncpa %s7, 0
    %9 = vsyncpa [#allocation4], 0
    %s10 = scalar_lea.sflag [#allocation4], 1
    %11 = vsyncpa %s10, 0
    loop: start=0, step=1, limit=4
    $region2: #{tpu_custom_call.1} parent=1 // loop_pre_header
      _
    $region3: #{tpu_custom_call.1} parent=1 // loop_header
      %s13 = sphi 0, %s17
      %p14 = scmp.ge.s32.totalorder %s13, 4
      %s23 = sphi 0, %s25
      %s26 = sphi 0, %s23
      %s27 = sphi 0, %s26
      %s43 = sphi 0, %s27
      %s49 = sphi 0, %s51
      %s52 = sphi 0, %s49
      %s53 = sphi 0, %s52
      %s69 = sphi 0, %s53
    $region4: #{tpu_custom_call.1} parent=1 // loop_header_branch
      %16 = sbr.rel (%p14) target = $region8
    $region5: #{tpu_custom_call.1} parent=1 // loop_body
      %s18 = ssub.s32 %s13, 1
      %s19 = ssub.s32 %s13, 2
      %s20 = sadd.s32 %s13, 1
      %s21 = ssub.s32 %s13, %s20
      %p22 = scmp.eq.s32.totalorder %s21, 0
      %s24 = sadd.s32 %s23, 1
      %s25 = scalar_select %p22, %s23, %s24
      %p28 = pneg %p22
      %p29 = scmp.eq.s32.totalorder %s13, 1
      %p30 = por %p28, %p29
      %p31 = scmp.ne.s32.totalorder %s23, %s26
      %p32 = scmp.eq.s32.totalorder %s13, 0
      %p33 = por %p31, %p32
      %p34 = scmp.ne.s32.totalorder %s23, %s26
      %p35 = scmp.eq.s32.totalorder %s18, 1
      %p36 = por %p34, %p35
      %p37 = scmp.ne.s32.totalorder %s26, %s27
      %p38 = scmp.eq.s32.totalorder %s18, 0
      %p39 = por %p37, %p38
      %p40 = scmp.ne.s32.totalorder %s26, %s27
      %p41 = scmp.eq.s32.totalorder %s19, 1
      %p42 = por %p40, %p41
      %p44 = scmp.ne.s32.totalorder %s27, %s43
      %p45 = scmp.eq.s32.totalorder %s19, 0
      %p46 = por %p44, %p45
      %s47 = ssub.s32 %s13, %s20
      %p48 = scmp.eq.s32.totalorder %s47, 0
      %s50 = sadd.s32 %s49, 1
      %s51 = scalar_select %p48, %s49, %s50
      %p54 = pneg %p48
      %p55 = scmp.eq.s32.totalorder %s13, 1
      %p56 = por %p54, %p55
      %p57 = scmp.ne.s32.totalorder %s49, %s52
      %p58 = scmp.eq.s32.totalorder %s13, 0
      %p59 = por %p57, %p58
      %p60 = scmp.ne.s32.totalorder %s49, %s52
      %p61 = scmp.eq.s32.totalorder %s18, 1
      %p62 = por %p60, %p61
      %p63 = scmp.ne.s32.totalorder %s52, %s53
      %p64 = scmp.eq.s32.totalorder %s18, 0
      %p65 = por %p63, %p64
      %p66 = scmp.ne.s32.totalorder %s52, %s53
      %p67 = scmp.eq.s32.totalorder %s19, 1
      %p68 = por %p66, %p67
      %p70 = scmp.ne.s32.totalorder %s53, %s69
      %p71 = scmp.eq.s32.totalorder %s19, 0
      %p72 = por %p70, %p71
      %p73 = scmp.le.s32.totalorder 1, %s13
      %p74 = scmp.lt.s32.totalorder %s13, 3
      %p75 = pnand %p73, %p74
      %p76 = pneg %p75
      // Predicated region
      $region9: #{tpu_custom_call.1} parent=5 // pred_check
        _
      $region10: #{tpu_custom_call.1} parent=5 // pred_check_branch
        %78 = sbr.rel (%p75) target = $region12
      $region11: #{tpu_custom_call.1} parent=5 // pred_region
        %s79 = ssub.s32 %s13, 1
      $region12: #{tpu_custom_call.1} parent=5 // pred_fallthru
        _
      %p80 = scmp.lt.s32.totalorder %s13, 2
      // Predicated region
      $region13: #{tpu_custom_call.1} parent=5 // pred_check
        %p81 = pneg %p80
      $region14: #{tpu_custom_call.1} parent=5 // pred_check_branch
        %83 = sbr.rel (%p81) target = $region16
      $region15: #{tpu_custom_call.1} parent=5 // pred_region
        // Predicated region
        $region17: #{tpu_custom_call.1} parent=15 // pred_check
          %p84 = pneg %p33
        $region18: #{tpu_custom_call.1} parent=15 // pred_check_branch
          %86 = sbr.rel (%p84) target = $region20
        $region19: #{tpu_custom_call.1} parent=15 // pred_region
          %s87 = sand.u32 %s23, 1
          %s88 = scalar_lea.sflag [#allocation3], %s87
          %s89 = sand.u32 %s23, 1
          %s90 = smul.addr %s89, 64
          %s91 = scalar_lea.vmem [#allocation2], %s90
          %s92 = smul.u32 4, %s13
          %s94 = ssub.s32 1024, 1024
          %95 = vsyncadd %s88, %s94
          %s96 = smul.addr %s92, 2
          %s97 = smul.addr %s96, 128
          %s98 = scalar_lea.hbm %s0, %s97
          %s99 = sshll.u32 %s91, 4
          %s100 = int_to_ptr.vmem [resolvable:$true] %s99
          %105 = dma.hbm_to_vmem [thread:$0]  %s98, 1024, %s100, %s88, 128, 128, 8
        $region20: #{tpu_custom_call.1} parent=15 // pred_fallthru
          _
      $region16: #{tpu_custom_call.1} parent=5 // pred_fallthru
        _
      %p106 = scmp.le.s32.totalorder 1, %s13
      %p107 = scmp.lt.s32.totalorder %s13, 3
      %p108 = pnand %p106, %p107
      %p109 = pneg %p108
      // Predicated region
      $region21: #{tpu_custom_call.1} parent=5 // pred_check
        _
      $region22: #{tpu_custom_call.1} parent=5 // pred_check_branch
        %111 = sbr.rel (%p108) target = $region24
      $region23: #{tpu_custom_call.1} parent=5 // pred_region
        %s112 = ssub.s32 %s13, 1
        %s113 = sand.u32 %s26, 1
        %s114 = scalar_lea.sflag [#allocation3], %s113
        %s115 = sand.u32 %s26, 1
        %s116 = smul.addr %s115, 64
        %s117 = scalar_lea.vmem [#allocation2], %s116
        // Predicated region
        $region25: #{tpu_custom_call.1} parent=23 // pred_check
          %p118 = pneg %p39
        $region26: #{tpu_custom_call.1} parent=23 // pred_check_branch
          %120 = sbr.rel (%p118) target = $region28
        $region27: #{tpu_custom_call.1} parent=23 // pred_region
          %121 = dma.done %s114, 1024
        $region28: #{tpu_custom_call.1} parent=23 // pred_fallthru
          _
        %s122 = sand.u32 %s26, 1
        %s123 = scalar_lea.sflag [#allocation3], %s122
        %s124 = sand.u32 %s26, 1
        %s125 = smul.addr %s124, 64
        %s126 = scalar_lea.vmem [#allocation2], %s125
        %p127 = pneg %p39
        %p128 = pneg %p36
        %p129 = pneg %p65
        %p130 = pneg %p62
        %s131 = sand.u32 %s52, 1
        %s132 = scalar_lea.sflag [#allocation4], %s131
        %s133 = sand.u32 %s52, 1
        %s134 = smul.addr %s133, 64
        %s135 = scalar_lea.vmem [#allocation5], %s134
        %s136 = smul.u32 4, %s18
        %s137 = smul.u32 4, %s18
        %v138 = vld [vmem:[%s117] sm:$0xff]
        %v139 = vld [vmem:[%s117 + $0x8] sm:$0xff]
        %v140 = vld [vmem:[%s117 + $0x10] sm:$0xff]
        %v141 = vld [vmem:[%s117 + $0x18] sm:$0xff]
        %v142 = vld [vmem:[%s117 + $0x20] sm:$0xff]
        %v143 = vld [vmem:[%s117 + $0x28] sm:$0xff]
        %v144 = vld [vmem:[%s117 + $0x30] sm:$0xff]
        %v145 = vld [vmem:[%s117 + $0x38] sm:$0xff]
        %vm146 = vcmp.ge.f32.partialorder %v138, 0.5019608
        %vm147 = vcmp.ge.f32.partialorder %v139, 0.5019608
        %vm148 = vcmp.ge.f32.partialorder %v140, 0.5019608
        %vm149 = vcmp.ge.f32.partialorder %v141, 0.5019608
        %vm150 = vcmp.ge.f32.partialorder %v142, 0.5019608
        %vm151 = vcmp.ge.f32.partialorder %v143, 0.5019608
        %vm152 = vcmp.ge.f32.partialorder %v144, 0.5019608
        %vm153 = vcmp.ge.f32.partialorder %v145, 0.5019608
        %v154 = vsel %vm146, 1, 0
        %v155 = vsel %vm147, 1, 0
        %v156 = vsel %vm148, 1, 0
        %v157 = vsel %vm149, 1, 0
        %v158 = vsel %vm150, 1, 0
        %v159 = vsel %vm151, 1, 0
        %v160 = vsel %vm152, 1, 0
        %v161 = vsel %vm153, 1, 0
        %v162 = vcvt.s32.f32 %v154
        %v163 = vcvt.s32.f32 %v155
        %v164 = vcvt.s32.f32 %v156
        %v165 = vcvt.s32.f32 %v157
        %v166 = vcvt.s32.f32 %v158
        %v167 = vcvt.s32.f32 %v159
        %v168 = vcvt.s32.f32 %v160
        %v169 = vcvt.s32.f32 %v161
        %178 = vrot.lane.b32.xlu0 %v162, 127
        %v179 = vpop.permute.xlu0 %178
        %180 = vrot.lane.b32.xlu0 %v163, 127
        %v181 = vpop.permute.xlu0 %180
        %182 = vrot.lane.b32.xlu0 %v164, 127
        %v183 = vpop.permute.xlu0 %182
        %184 = vrot.lane.b32.xlu0 %v165, 127
        %v185 = vpop.permute.xlu0 %184
        %186 = vrot.lane.b32.xlu0 %v166, 127
        %v187 = vpop.permute.xlu0 %186
        %188 = vrot.lane.b32.xlu0 %v167, 127
        %v189 = vpop.permute.xlu0 %188
        %190 = vrot.lane.b32.xlu0 %v168, 127
        %v191 = vpop.permute.xlu0 %190
        %192 = vrot.lane.b32.xlu0 %v169, 127
        %v193 = vpop.permute.xlu0 %192
        %202 = vrot.lane.b32.xlu0 %v162, 1
        %v203 = vpop.permute.xlu0 %202
        %204 = vrot.lane.b32.xlu0 %v163, 1
        %v205 = vpop.permute.xlu0 %204
        %206 = vrot.lane.b32.xlu0 %v164, 1
        %v207 = vpop.permute.xlu0 %206
        %208 = vrot.lane.b32.xlu0 %v165, 1
        %v209 = vpop.permute.xlu0 %208
        %210 = vrot.lane.b32.xlu0 %v166, 1
        %v211 = vpop.permute.xlu0 %210
        %212 = vrot.lane.b32.xlu0 %v167, 1
        %v213 = vpop.permute.xlu0 %212
        %214 = vrot.lane.b32.xlu0 %v168, 1
        %v215 = vpop.permute.xlu0 %214
        %216 = vrot.lane.b32.xlu0 %v169, 1
        %v217 = vpop.permute.xlu0 %216
        %226 = vrot.lane.b32.xlu0 %v162, 3
        %v227 = vpop.permute.xlu0 %226
        %228 = vrot.lane.b32.xlu0 %v163, 3
        %v229 = vpop.permute.xlu0 %228
        %230 = vrot.lane.b32.xlu0 %v164, 3
        %v231 = vpop.permute.xlu0 %230
        %232 = vrot.lane.b32.xlu0 %v165, 3
        %v233 = vpop.permute.xlu0 %232
        %234 = vrot.lane.b32.xlu0 %v166, 3
        %v235 = vpop.permute.xlu0 %234
        %236 = vrot.lane.b32.xlu0 %v167, 3
        %v237 = vpop.permute.xlu0 %236
        %238 = vrot.lane.b32.xlu0 %v168, 3
        %v239 = vpop.permute.xlu0 %238
        %240 = vrot.lane.b32.xlu0 %v169, 3
        %v241 = vpop.permute.xlu0 %240
        %vm250 = vcmask 7168
        %v251 = vsel %vm250, %v179, %v203
        %v252 = vsel %vm250, %v181, %v205
        %v253 = vsel %vm250, %v183, %v207
        %v254 = vsel %vm250, %v185, %v209
        %v255 = vsel %vm250, %v187, %v211
        %v256 = vsel %vm250, %v189, %v213
        %v257 = vsel %vm250, %v191, %v215
        %v258 = vsel %vm250, %v193, %v217
        %vm259 = vcmask 138240
        %v260 = vsel %vm259, %v251, %v227
        %v261 = vsel %vm259, %v252, %v229
        %v262 = vsel %vm259, %v253, %v231
        %v263 = vsel %vm259, %v254, %v233
        %v264 = vsel %vm259, %v255, %v235
        %v265 = vsel %vm259, %v256, %v237
        %v266 = vsel %vm259, %v257, %v239
        %v267 = vsel %vm259, %v258, %v241
        %276 = vrot.lane.b32.xlu0 %v260, 127
        %v277 = vpop.permute.xlu0 %276
        %278 = vrot.lane.b32.xlu0 %v261, 127
        %v279 = vpop.permute.xlu0 %278
        %280 = vrot.lane.b32.xlu0 %v262, 127
        %v281 = vpop.permute.xlu0 %280
        %282 = vrot.lane.b32.xlu0 %v263, 127
        %v283 = vpop.permute.xlu0 %282
        %284 = vrot.lane.b32.xlu0 %v264, 127
        %v285 = vpop.permute.xlu0 %284
        %286 = vrot.lane.b32.xlu0 %v265, 127
        %v287 = vpop.permute.xlu0 %286
        %288 = vrot.lane.b32.xlu0 %v266, 127
        %v289 = vpop.permute.xlu0 %288
        %290 = vrot.lane.b32.xlu0 %v267, 127
        %v291 = vpop.permute.xlu0 %290
        %v300 = vadd.f32 %v260, %v277
        %v301 = vadd.f32 %v261, %v279
        %v302 = vadd.f32 %v262, %v281
        %v303 = vadd.f32 %v263, %v283
        %v304 = vadd.f32 %v264, %v285
        %v305 = vadd.f32 %v265, %v287
        %v306 = vadd.f32 %v266, %v289
        %v307 = vadd.f32 %v267, %v291
        %308 = vrot.lane.b32.xlu0 %v260, 126
        %v309 = vpop.permute.xlu0 %308
        %310 = vrot.lane.b32.xlu0 %v261, 126
        %v311 = vpop.permute.xlu0 %310
        %312 = vrot.lane.b32.xlu0 %v262, 126
        %v313 = vpop.permute.xlu0 %312
        %314 = vrot.lane.b32.xlu0 %v263, 126
        %v315 = vpop.permute.xlu0 %314
        %316 = vrot.lane.b32.xlu0 %v264, 126
        %v317 = vpop.permute.xlu0 %316
        %318 = vrot.lane.b32.xlu0 %v265, 126
        %v319 = vpop.permute.xlu0 %318
        %320 = vrot.lane.b32.xlu0 %v266, 126
        %v321 = vpop.permute.xlu0 %320
        %322 = vrot.lane.b32.xlu0 %v267, 126
        %v323 = vpop.permute.xlu0 %322
        %v332 = vadd.f32 %v300, %v309
        %v333 = vadd.f32 %v301, %v311
        %v334 = vadd.f32 %v302, %v313
        %v335 = vadd.f32 %v303, %v315
        %v336 = vadd.f32 %v304, %v317
        %v337 = vadd.f32 %v305, %v319
        %v338 = vadd.f32 %v306, %v321
        %v339 = vadd.f32 %v307, %v323
        %v344 = vrot.slane %v332, 1
        %v345 = vrot.slane %v334, 1
        %v346 = vrot.slane %v336, 1
        %v347 = vrot.slane %v338, 1
        %vm356 = vcmask 1040384
        %v357 = vrot.slane %v332, 7
        %v358 = vrot.slane %v333, 7
        %v359 = vsel %vm356, %v357, %v358
        %v360 = vrot.slane %v334, 7
        %v361 = vrot.slane %v335, 7
        %v362 = vsel %vm356, %v360, %v361
        %v363 = vrot.slane %v336, 7
        %v364 = vrot.slane %v337, 7
        %v365 = vsel %vm356, %v363, %v364
        %v366 = vrot.slane %v338, 7
        %v367 = vrot.slane %v339, 7
        %v368 = vsel %vm356, %v366, %v367
        %v381 = vrot.slane %v333, 5
        %v382 = vrot.slane %v335, 5
        %v383 = vrot.slane %v337, 5
        %v384 = vrot.slane %v339, 5
        %v389 = vsel %vm356, %v344, %v357
        %v390 = vsel %vm356, %v345, %v360
        %v391 = vsel %vm356, %v346, %v363
        %v392 = vsel %vm356, %v347, %v366
        %v393 = vsel %vm356, %v358, %v381
        %v394 = vsel %vm356, %v361, %v382
        %v395 = vsel %vm356, %v364, %v383
        %v396 = vsel %vm356, %v367, %v384
        %vm405 = vcmask 1046528
        %v406 = vrot.slane %v389, 1
        %v407 = vrot.slane %v359, 1
        %v408 = vsel %vm405, %v406, %v407
        %v409 = vrot.slane %v393, 1
        %v410 = vsel %vm405, %v407, %v409
        %v411 = vrot.slane %v390, 1
        %v412 = vrot.slane %v362, 1
        %v413 = vsel %vm405, %v411, %v412
        %v414 = vrot.slane %v394, 1
        %v415 = vsel %vm405, %v412, %v414
        %v416 = vrot.slane %v391, 1
        %v417 = vrot.slane %v365, 1
        %v418 = vsel %vm405, %v416, %v417
        %v419 = vrot.slane %v395, 1
        %v420 = vsel %vm405, %v417, %v419
        %v421 = vrot.slane %v392, 1
        %v422 = vrot.slane %v368, 1
        %v423 = vsel %vm405, %v421, %v422
        %v424 = vrot.slane %v396, 1
        %v425 = vsel %vm405, %v422, %v424
        %v434 = vadd.f32 %v389, %v408
        %v435 = vadd.f32 %v359, %v410
        %v436 = vadd.f32 %v390, %v413
        %v437 = vadd.f32 %v362, %v415
        %v438 = vadd.f32 %v391, %v418
        %v439 = vadd.f32 %v365, %v420
        %v440 = vadd.f32 %v392, %v423
        %v441 = vadd.f32 %v368, %v425
        %vm442 = vcmask 1045504
        %v443 = vrot.slane %v389, 2
        %v444 = vrot.slane %v359, 2
        %v445 = vsel %vm442, %v443, %v444
        %v446 = vrot.slane %v393, 2
        %v447 = vsel %vm442, %v444, %v446
        %v448 = vrot.slane %v390, 2
        %v449 = vrot.slane %v362, 2
        %v450 = vsel %vm442, %v448, %v449
        %v451 = vrot.slane %v394, 2
        %v452 = vsel %vm442, %v449, %v451
        %v453 = vrot.slane %v391, 2
        %v454 = vrot.slane %v365, 2
        %v455 = vsel %vm442, %v453, %v454
        %v456 = vrot.slane %v395, 2
        %v457 = vsel %vm442, %v454, %v456
        %v458 = vrot.slane %v392, 2
        %v459 = vrot.slane %v368, 2
        %v460 = vsel %vm442, %v458, %v459
        %v461 = vrot.slane %v396, 2
        %v462 = vsel %vm442, %v459, %v461
        %v471 = vadd.f32 %v434, %v445
        %v472 = vadd.f32 %v435, %v447
        %v473 = vadd.f32 %v436, %v450
        %v474 = vadd.f32 %v437, %v452
        %v475 = vadd.f32 %v438, %v455
        %v476 = vadd.f32 %v439, %v457
        %v477 = vadd.f32 %v440, %v460
        %v478 = vadd.f32 %v441, %v462
        %vm479 = vcmp.ge.f32.partialorder %v471, 1.0
        %vm480 = vcmp.ge.f32.partialorder %v472, 1.0
        %vm481 = vcmp.ge.f32.partialorder %v473, 1.0
        %vm482 = vcmp.ge.f32.partialorder %v474, 1.0
        %vm483 = vcmp.ge.f32.partialorder %v475, 1.0
        %vm484 = vcmp.ge.f32.partialorder %v476, 1.0
        %vm485 = vcmp.ge.f32.partialorder %v477, 1.0
        %vm486 = vcmp.ge.f32.partialorder %v478, 1.0
        %vm487 = vcmp.le.f32.partialorder %v471, 3.0
        %vm488 = vcmp.le.f32.partialorder %v472, 3.0
        %vm489 = vcmp.le.f32.partialorder %v473, 3.0
        %vm490 = vcmp.le.f32.partialorder %v474, 3.0
        %vm491 = vcmp.le.f32.partialorder %v475, 3.0
        %vm492 = vcmp.le.f32.partialorder %v476, 3.0
        %vm493 = vcmp.le.f32.partialorder %v477, 3.0
        %vm494 = vcmp.le.f32.partialorder %v478, 3.0
        %vm495 = vmand %vm479, %vm487
        %vm496 = vmand %vm480, %vm488
        %vm497 = vmand %vm481, %vm489
        %vm498 = vmand %vm482, %vm490
        %vm499 = vmand %vm483, %vm491
        %vm500 = vmand %vm484, %vm492
        %vm501 = vmand %vm485, %vm493
        %vm502 = vmand %vm486, %vm494
        %v503 = vsel %vm495, 0.0, %v138
        %v504 = vsel %vm496, 0.0, %v139
        %v505 = vsel %vm497, 0.0, %v140
        %v506 = vsel %vm498, 0.0, %v141
        %v507 = vsel %vm499, 0.0, %v142
        %v508 = vsel %vm500, 0.0, %v143
        %v509 = vsel %vm501, 0.0, %v144
        %v510 = vsel %vm502, 0.0, %v145
        %vm511 = vcmask 130048
        %512 = vst.msk [vmem:[%s135] sm:$0xff] %vm511, %v503
        %513 = vst.msk [vmem:[%s135 + $0x8] sm:$0xff] %vm511, %v504
        %514 = vst.msk [vmem:[%s135 + $0x10] sm:$0xff] %vm511, %v505
        %515 = vst.msk [vmem:[%s135 + $0x18] sm:$0xff] %vm511, %v506
        %516 = vst.msk [vmem:[%s135 + $0x20] sm:$0xff] %vm511, %v507
        %517 = vst.msk [vmem:[%s135 + $0x28] sm:$0xff] %vm511, %v508
        %518 = vst.msk [vmem:[%s135 + $0x30] sm:$0xff] %vm511, %v509
        %519 = vst.msk [vmem:[%s135 + $0x38] sm:$0xff] %vm511, %v510
        %s520 = sand.u32 %s52, 1
        %s521 = scalar_lea.sflag [#allocation4], %s520
        %s522 = sand.u32 %s52, 1
        %s523 = smul.addr %s522, 64
        %s524 = scalar_lea.vmem [#allocation5], %s523
        // Predicated region
        $region29: #{tpu_custom_call.1} parent=23 // pred_check
          %p525 = pneg %p62
        $region30: #{tpu_custom_call.1} parent=23 // pred_check_branch
          %527 = sbr.rel (%p525) target = $region32
        $region31: #{tpu_custom_call.1} parent=23 // pred_region
          %s528 = smul.u32 4, %s18
          %s530 = ssub.s32 1024, 1024
          %531 = vsyncadd %s521, %s530
          %s532 = smul.addr %s528, 2
          %s533 = smul.addr %s532, 128
          %s534 = scalar_lea.hbm %s1, %s533
          %s535 = sshll.u32 %s524, 4
          %s536 = int_to_ptr.vmem [resolvable:$true] %s535
          %541 = dma.vmem_to_hbm [thread:$0]  %s536, 1024, %s534, %s521, 128, 128, 8
        $region32: #{tpu_custom_call.1} parent=23 // pred_fallthru
          _
      $region24: #{tpu_custom_call.1} parent=5 // pred_fallthru
        _
      %p542 = scmp.le.s32.totalorder 2, %s13
      // Predicated region
      $region33: #{tpu_custom_call.1} parent=5 // pred_check
        %p543 = pneg %p542
      $region34: #{tpu_custom_call.1} parent=5 // pred_check_branch
        %545 = sbr.rel (%p543) target = $region36
      $region35: #{tpu_custom_call.1} parent=5 // pred_region
        %s546 = ssub.s32 %s13, 2
        // Predicated region
        $region37: #{tpu_custom_call.1} parent=35 // pred_check
          %p547 = pneg %p68
        $region38: #{tpu_custom_call.1} parent=35 // pred_check_branch
          %549 = sbr.rel (%p547) target = $region40
        $region39: #{tpu_custom_call.1} parent=35 // pred_region
          %s550 = sand.u32 %s53, 1
          %s551 = scalar_lea.sflag [#allocation4], %s550
          %s552 = sand.u32 %s53, 1
          %s553 = smul.addr %s552, 64
          %s554 = scalar_lea.vmem [#allocation5], %s553
          %555 = dma.done %s551, 1024
        $region40: #{tpu_custom_call.1} parent=35 // pred_fallthru
          _
      $region36: #{tpu_custom_call.1} parent=5 // pred_fallthru
        _
    $region6: #{tpu_custom_call.1} parent=1 // loop_footer
      %s17 = sadd.s32 1, %s13
    $region7: #{tpu_custom_call.1} parent=1 // loop_footer_branch
      %12 = sbr.rel target = $region3
    $region8: #{tpu_custom_call.1} parent=1 // loop_exit
      _
    %556 = vsyncpa [#allocation3], 1
    %s557 = scalar_lea.sflag [#allocation3], 1
    %558 = vsyncpa %s557, 1
    %559 = vsyncpa [#allocation4], 1
    %s560 = scalar_lea.sflag [#allocation4], 1
    %561 = vsyncpa %s560, 1

</llo_original>
